<compile_context>
chip_gen: v7x
topology: tpu7x:2x2x1
jax: 0.10.0
libtpu: 0.0.40
codegen_flags: <defaults>
</compile_context>

<pallas_src>
import functools

import jax
import jax.numpy as jnp
from jax.experimental import pallas as pl
from jax.experimental.pallas import tpu as pltpu


def _attention_kernel(enc_ref, wet_ref, hproj_ref, v_ref, o_ref, *, seq_len, matmul_dtype):
    # enc_ref  : (Bt, Lp, 2H)  encoder-outputs block (native dtype, features on the lane axis)
    # wet_ref  : (2H, H)       encoder-side weight slice, transposed (f32, cast in-kernel)
    # hproj_ref: (Bt, H)       hidden[-1] @ W_h.T + b   (bias pre-folded, f32)
    # v_ref    : (1, H)        attention vector (row layout, f32)
    # o_ref    : (Bt, Lp)      softmax attention weights, Lp lane-dense (Lp % 128 == 0)
    bt, lp, two_h = enc_ref.shape
    h = wet_ref.shape[1]

    # Cast to the MXU feed dtype inside the kernel (no-op when equal to the input dtype).
    enc = enc_ref[...].astype(matmul_dtype)
    wet = wet_ref[...].astype(matmul_dtype)

    # Single MXU matmul over the flattened (Bt*Lp, 2H) rows; Lp % 8 == 0 so the flatten
    # and the reshape back are tile-aligned (no VMEM relayout copy). f32 accumulation.
    pre = jnp.dot(enc.reshape(bt * lp, two_h), wet,
                  preferred_element_type=jnp.float32).reshape(bt, lp, h)

    # Per-batch-row hidden projection (+bias) and tanh — all f32 (required on v5e).
    energy = jnp.tanh(pre + hproj_ref[...][:, None, :])                   # (Bt, Lp, H)

    # score = sum(v * energy, -1): VPU multiply + XLU lane reduce.
    score = jnp.sum(energy * v_ref[...], axis=-1)                         # (Bt, Lp)

    # Mask padded sequence positions before the softmax.
    if seq_len != lp:
        idx = jax.lax.broadcasted_iota(jnp.int32, (bt, lp), 1)
        score = jnp.where(idx < seq_len, score, -jnp.inf)

    # Softmax over the sequence (lane) axis; exact normalization (rows sum to 1).
    m = jnp.max(score, axis=-1, keepdims=True)                            # (Bt, 1)
    e = jnp.exp(score - m)
    denom = jnp.sum(e, axis=-1, keepdims=True)                            # (Bt, 1)
    o_ref[...] = e / denom                                                # (Bt, Lp)


def _round_up(x, m):
    return -(-x // m) * m


def _physical_vmem_bytes():
    try:
        return int(pltpu.get_tpu_info().vmem_capacity_bytes)
    except Exception:
        return 64 << 20                      # conservative fallback (v7x per-TC VMEM)


def _choose_block_b(B, L_pad, two_h, enc_itemsize, vmem_physical):
    """Batch-block size: aim for ~1024 flattened (Bt*Lp) MXU rows per grid step, cap the
    enc block per generation (8 MiB when physical VMEM <= 64 MiB, i.e. v7x; 16 MiB on
    v5e/v6e), keep blocks (8,128)-legal, and keep >= 2 grid steps when B >= 16 so both
    v7x TensorCores get work."""
    per_buf_cap = (8 << 20) if vmem_physical <= (64 << 20) else (16 << 20)
    bb = _round_up(max(1, -(-1024 // L_pad)), 8)          # ceil(1024/Lp), multiple of 8
    while bb > 8 and bb * L_pad * two_h * enc_itemsize > per_buf_cap:
        bb -= 8
    if B <= bb:
        return B                                          # small batch: single full block
    if B >= 16:                                           # ensure >= 2 grid steps (v7x 2 TCs)
        bb = min(bb, max(8, (_round_up(B, 8) // 2 // 8) * 8))
    return bb


def attention_forward(hidden, encoder_outputs, W, b, v, *, block_b=None, matmul_dtype=None):
    """hidden: (num_layers, B, H); encoder_outputs: (B, L, 2H); W: (H, 3H); b: (H,); v: (H,).

    matmul_dtype: dtype fed to the MXU (pass jnp.bfloat16 for 2x MXU rate on all generations;
    the cast happens in-kernel, accumulation and all elementwise math stay f32). Defaults to
    the encoder_outputs dtype.
    """
    B, L, two_h = encoder_outputs.shape
    H = W.shape[0]
    assert two_h == 2 * H and W.shape[1] == 3 * H

    enc_dtype = encoder_outputs.dtype
    if matmul_dtype is None:
        matmul_dtype = enc_dtype

    W32 = W.astype(jnp.float32)
    w_h = W32[:, :H]                                      # hidden-side slice  (H, H)
    w_e = W32[:, H:]                                      # encoder-side slice (H, 2H)

    # Tiny (B, H) projection of hidden[-1] with the bias folded in — replaces the (B, L, 3H)
    # broadcast+concat entirely (kernel streams only K = 2H encoder features).
    h_proj = jnp.dot(hidden[-1].astype(jnp.float32), w_h.T) + b.astype(jnp.float32)  # (B, H)
    we_t = w_e.T                                          # (2H, H), f32, cast in-kernel
    v_row = v.reshape(1, H).astype(jnp.float32)           # (1, H)

    # Pad L to a multiple of 128: unmasked lane-dense stores + tile-aligned flatten.
    L_pad = _round_up(L, 128)
    enc = encoder_outputs
    if L_pad != L:
        enc = jnp.pad(enc, ((0, 0), (0, L_pad - L), (0, 0)))

    vmem_physical = _physical_vmem_bytes()
    enc_itemsize = jnp.dtype(enc_dtype).itemsize
    if block_b is None:
        block_b = _choose_block_b(B, L_pad, two_h, enc_itemsize, vmem_physical)

    # Pad B so block_b divides it (padded rows are zeros and discarded after the call).
    B_pad = _round_up(B, block_b)
    if B_pad != B:
        enc = jnp.pad(enc, ((0, B_pad - B), (0, 0), (0, 0)))
        h_proj = jnp.pad(h_proj, ((0, B_pad - B), (0, 0)))

    # Generation-aware VMEM budget: 2x double-buffered enc + 2x out + f32 intermediates.
    enc_blk = block_b * L_pad * two_h * enc_itemsize
    out_blk = block_b * L_pad * 4
    interm = 3 * block_b * L_pad * H * 4 \
        + block_b * L_pad * two_h * jnp.dtype(matmul_dtype).itemsize
    vmem_est = int(1.5 * (2 * enc_blk + 2 * out_blk + interm)) + (4 << 20)
    vmem_limit = max(32 << 20, min(vmem_est, vmem_physical - (16 << 20)))

    cost = pl.CostEstimate(
        flops=2 * B_pad * L_pad * two_h * H,
        transcendentals=B_pad * L_pad * H,
        bytes_accessed=B_pad * L_pad * two_h * enc_itemsize + B_pad * L_pad * 4,
    )

    kernel = functools.partial(_attention_kernel, seq_len=L, matmul_dtype=matmul_dtype)

    out = pl.pallas_call(
        kernel,
        out_shape=jax.ShapeDtypeStruct((B_pad, L_pad), jnp.float32),
        grid=(B_pad // block_b,),
        in_specs=[
            pl.BlockSpec((block_b, L_pad, two_h), lambda i: (i, 0, 0)),   # encoder outputs
            pl.BlockSpec((two_h, H), lambda i: (0, 0)),                   # W_e^T (resident)
            pl.BlockSpec((block_b, H), lambda i: (i, 0)),                 # h_proj (+bias)
            pl.BlockSpec((1, H), lambda i: (0, 0)),                       # v
        ],
        out_specs=pl.BlockSpec((block_b, L_pad), lambda i: (i, 0)),       # lane-dense (Bt, Lp)
        compiler_params=pltpu.CompilerParams(
            dimension_semantics=("parallel",),                            # megacore / 2-TC sharding
            vmem_limit_bytes=int(vmem_limit),
        ),
        cost_estimate=cost,
    )(enc, we_t, h_proj, v_row)

    return out[:B, :L]                                                    # (B, L)


def _reference(hidden, encoder_outputs, W, b, v):
    # pure-JAX reference mirroring the PyTorch forward (f32 throughout)
    B, L, _ = encoder_outputs.shape
    H = W.shape[0]
    h_rep = jnp.broadcast_to(hidden[-1][:, None, :], (B, L, H))
    x = jnp.concatenate([h_rep, encoder_outputs], axis=2)
    energy = jnp.tanh(jnp.einsum("blk,hk->blh", x, W) + b)
    score = jnp.sum(v * energy, axis=2)
    return jax.nn.softmax(score, axis=1)


if __name__ == "__main__":
    H = 32        # hidden_size (small for the synthetic test)
    B = 2         # batch
    L = 8         # max_len (sequence length of encoder outputs)
    NUM_LAYERS = 2

    key = jax.random.PRNGKey(0)
    k_hid, k_enc, k_w, k_b, k_v = jax.random.split(key, 5)

    hidden = jax.random.normal(k_hid, (NUM_LAYERS, B, H), dtype=jnp.float32)
    encoder_outputs = jax.random.normal(k_enc, (B, L, 2 * H), dtype=jnp.float32)

    # deterministic parameter init (shapes follow nn.Linear(3H, H) and nn.Parameter(rand(H)))
    bound = 1.0 / float(jnp.sqrt(3.0 * H))
    W = jax.random.uniform(k_w, (H, 3 * H), minval=-bound, maxval=bound, dtype=jnp.float32)
    b = jax.random.uniform(k_b, (H,), minval=-bound, maxval=bound, dtype=jnp.float32)
    v = jax.random.uniform(k_v, (H,), minval=0.0, maxval=1.0, dtype=jnp.float32)

    out = attention_forward(hidden, encoder_outputs, W, b, v)
    out = jax.block_until_ready(out)

    ref = _reference(hidden, encoder_outputs, W, b, v)
    assert out.shape == (B, L), out.shape
    assert jnp.allclose(out, ref, atol=1e-3, rtol=1e-3), (out, ref)
    assert jnp.allclose(jnp.sum(out, axis=1), jnp.ones((B,)), atol=1e-4)

    # Second config exercising multi-step batch blocking and the B/L padding paths.
    B2, L2 = 16, 12
    k2 = jax.random.split(key, 4)
    hidden2 = jax.random.normal(k2[0], (NUM_LAYERS, B2, H), dtype=jnp.float32)
    enc2 = jax.random.normal(k2[1], (B2, L2, 2 * H), dtype=jnp.float32)
    out2 = jax.block_until_ready(attention_forward(hidden2, enc2, W, b, v))
    ref2 = _reference(hidden2, enc2, W, b, v)
    assert out2.shape == (B2, L2), out2.shape
    assert jnp.allclose(out2, ref2, atol=1e-3, rtol=1e-3)
    assert jnp.allclose(jnp.sum(out2, axis=1), jnp.ones((B2,)), atol=1e-4)

    print("KERNEL_OK")
</pallas_src>

<mosaic_0001>
module attributes {stable_mosaic.version = 11 : i64} {
  func.func @_attention_kernel(%arg0: i32, %arg1: memref<2x128x64xf32, #tpu.memory_space<vmem>>, %arg2: memref<64x32xf32, #tpu.memory_space<vmem>>, %arg3: memref<2x32xf32, #tpu.memory_space<vmem>>, %arg4: memref<1x32xf32, #tpu.memory_space<vmem>>, %arg5: memref<2x128xf32, #tpu.memory_space<vmem>>) attributes {dimension_semantics = [#tpu.dimension_semantics<parallel>], iteration_bounds = array<i64: 1>, scalar_prefetch = 0 : i64, scratch_operands = 0 : i64, tpu.core_type = #tpu.core_type<tc>, window_params = [{transform_indices = @transform_0, window_bounds = array<i64: 2, 128, 64>}, {pipeline_mode = #tpu.pipeline_mode<synchronous>, transform_indices = @transform_1, window_bounds = array<i64: 64, 32>}, {transform_indices = @transform_2, window_bounds = array<i64: 2, 32>}, {pipeline_mode = #tpu.pipeline_mode<synchronous>, transform_indices = @transform_3, window_bounds = array<i64: 1, 32>}, {transform_indices = @transform_4, window_bounds = array<i64: 2, 128>}]} {
    %c0 = arith.constant 0 : index
    %c0_0 = arith.constant 0 : index
    %c0_1 = arith.constant 0 : index
    %0 = vector.load %arg1[%c0, %c0_0, %c0_1] : memref<2x128x64xf32, #tpu.memory_space<vmem>>, vector<2x128x64xf32>
    %c0_2 = arith.constant 0 : index
    %c0_3 = arith.constant 0 : index
    %1 = vector.load %arg2[%c0_2, %c0_3] : memref<64x32xf32, #tpu.memory_space<vmem>>, vector<64x32xf32>
    %2 = vector.shape_cast %0 : vector<2x128x64xf32> to vector<256x64xf32>
    %cst = arith.constant dense<0.000000e+00> : vector<256x32xf32>
    %3 = tpu.matmul %2, %1, %cst {dimension_numbers = #tpu.dot_dimension_numbers<[1], [0], [0], [1], [0, 0, 1, 1], [], []>} : vector<256x64xf32>, vector<64x32xf32>, vector<256x32xf32> -> vector<256x32xf32>
    %4 = vector.shape_cast %3 : vector<256x32xf32> to vector<2x128x32xf32>
    %c0_4 = arith.constant 0 : index
    %c0_5 = arith.constant 0 : index
    %5 = vector.load %arg3[%c0_4, %c0_5] : memref<2x32xf32, #tpu.memory_space<vmem>>, vector<2x32xf32>
    %6 = vector.shape_cast %5 : vector<2x32xf32> to vector<2x1x32xf32>
    %7 = vector.broadcast %6 : vector<2x1x32xf32> to vector<2x128x32xf32>
    %8 = arith.addf %4, %7 : vector<2x128x32xf32>
    %9 = math.tanh %8 : vector<2x128x32xf32>
    %c0_6 = arith.constant 0 : index
    %c0_7 = arith.constant 0 : index
    %10 = vector.load %arg4[%c0_6, %c0_7] : memref<1x32xf32, #tpu.memory_space<vmem>>, vector<1x32xf32>
    %11 = vector.shape_cast %10 : vector<1x32xf32> to vector<1x1x32xf32>
    %12 = vector.broadcast %11 : vector<1x1x32xf32> to vector<2x128x32xf32>
    %13 = arith.mulf %9, %12 : vector<2x128x32xf32>
    %cst_8 = arith.constant dense<0.000000e+00> : vector<2x128xf32>
    %14 = vector.multi_reduction <add>, %13, %cst_8 [2] : vector<2x128x32xf32> to vector<2x128xf32>
    %15 = tpu.iota {dimensions = array<i32: 1>} : vector<2x128xi32>
    %c8_i32 = arith.constant 8 : i32
    %16 = vector.broadcast %c8_i32 : i32 to vector<2x128xi32>
    %17 = arith.cmpi slt, %15, %16 : vector<2x128xi32>
    %cst_9 = arith.constant 0xFF800000 : f32
    %18 = vector.broadcast %cst_9 : f32 to vector<2x128xf32>
    %19 = arith.select %17, %14, %18 : vector<2x128xi1>, vector<2x128xf32>
    %cst_10 = arith.constant dense<0xFF800000> : vector<2xf32>
    %20 = vector.multi_reduction <maximumf>, %19, %cst_10 [1] : vector<2x128xf32> to vector<2xf32>
    %21 = vector.shape_cast %20 : vector<2xf32> to vector<2x1xf32>
    %22 = vector.broadcast %21 : vector<2x1xf32> to vector<2x128xf32>
    %23 = arith.subf %19, %22 : vector<2x128xf32>
    %24 = math.exp %23 : vector<2x128xf32>
    %cst_11 = arith.constant dense<0.000000e+00> : vector<2xf32>
    %25 = vector.multi_reduction <add>, %24, %cst_11 [1] : vector<2x128xf32> to vector<2xf32>
    %26 = vector.shape_cast %25 : vector<2xf32> to vector<2x1xf32>
    %27 = vector.broadcast %26 : vector<2x1xf32> to vector<2x128xf32>
    %28 = arith.divf %24, %27 : vector<2x128xf32>
    %c0_12 = arith.constant 0 : index
    %c0_13 = arith.constant 0 : index
    %29 = vector.load %arg5[%c0_12, %c0_13] : memref<2x128xf32, #tpu.memory_space<vmem>>, vector<2x128xf32>
    tpu.vector_store %arg5[%c0_12, %c0_13], %28 {strides = array<i32>} : memref<2x128xf32, #tpu.memory_space<vmem>>, vector<2x128xf32>,
    return
  }
  func.func @transform_0(%arg0: i32) -> (i32, i32, i32) {
    %c0_i32 = arith.constant 0 : i32
    %c0_i32_0 = arith.constant 0 : i32
    %c0_i32_1 = arith.constant 0 : i32
    return %arg0, %c0_i32, %c0_i32_0 : i32, i32, i32
  }
  func.func @transform_1(%arg0: i32) -> (i32, i32) {
    %c0_i32 = arith.constant 0 : i32
    %c0_i32_0 = arith.constant 0 : i32
    %c0_i32_1 = arith.constant 0 : i32
    return %c0_i32, %c0_i32_0 : i32, i32
  }
  func.func @transform_2(%arg0: i32) -> (i32, i32) {
    %c0_i32 = arith.constant 0 : i32
    %c0_i32_0 = arith.constant 0 : i32
    return %arg0, %c0_i32 : i32, i32
  }
  func.func @transform_3(%arg0: i32) -> (i32, i32) {
    %c0_i32 = arith.constant 0 : i32
    %c0_i32_0 = arith.constant 0 : i32
    %c0_i32_1 = arith.constant 0 : i32
    return %c0_i32, %c0_i32_0 : i32, i32
  }
  func.func @transform_4(%arg0: i32) -> (i32, i32) {
    %c0_i32 = arith.constant 0 : i32
    %c0_i32_0 = arith.constant 0 : i32
    return %arg0, %c0_i32 : i32, i32
  }
}

</mosaic_0001>

<llo_original>
// kernel: tpu_custom_call.1
$region0: #{tpu_custom_call.1}
  #allocation0 [shape = 'u32[]', space=smem, size = 0x4, offset = 0x4, fixed_abs, tag = 'smem constant byte address 0x4 - core index']
  #allocation1 [shape = 'u32[144,128]{1,0:T(1,128)}', space=vmem, size = 0x12000, scoped, tag = 'internal scratch']
  %s0 = inlined_call_operand.vmem [shape: f32[2,128,64], index: 0, kind: input, shape index: {}]
  %s1 = inlined_call_operand.vmem [shape: f32[64,32], index: 1, kind: input, shape index: {}]
  %s2 = inlined_call_operand.vmem [shape: f32[2,32], index: 2, kind: input, shape index: {}]
  %s3 = inlined_call_operand.vmem [shape: f32[1,32], index: 3, kind: input, shape index: {}]
  %s4 = inlined_call_operand.hbm [shape: f32[2,128], index: 4, kind: output, shape index: {}]
  %s5 = sld [smem:[#allocation0]]
  $region26: #{tpu_custom_call.1} parent=0
    _
  %s7 = ssub.s32 1, %s5
  %s8 = scalar_select 0, %s7, %s5
  $region1: #{tpu_custom_call.1} parent=0
    #allocation2 [shape = 'u8[1024]{0}', space=vmem, size = 0x400, scoped, tag = 'output window, operand 0, single buffered']
    #allocation3 [shape = 's32[1]{0}', space=sflag, size = 0x4, scoped, tag = 'scoped memory for tpu_custom_call.1']
    %9 = vsyncpa [#allocation3], 0
    // Predicated region
    $region2: #{tpu_custom_call.1} parent=1 // pred_check
      _
    $region3: #{tpu_custom_call.1} parent=1 // pred_check_branch
      %11 = sbr.rel (0) target = $region5
    $region4: #{tpu_custom_call.1} parent=1 // pred_region
      _
    $region5: #{tpu_custom_call.1} parent=1 // pred_fallthru
      _
    // Predicated region
    $region6: #{tpu_custom_call.1} parent=1 // pred_check
      _
    $region7: #{tpu_custom_call.1} parent=1 // pred_check_branch
      %13 = sbr.rel (0) target = $region9
    $region8: #{tpu_custom_call.1} parent=1 // pred_region
      _
    $region9: #{tpu_custom_call.1} parent=1 // pred_fallthru
      _
    // Predicated region
    $region10: #{tpu_custom_call.1} parent=1 // pred_check
      _
    $region11: #{tpu_custom_call.1} parent=1 // pred_check_branch
      %15 = sbr.rel (0) target = $region13
    $region12: #{tpu_custom_call.1} parent=1 // pred_region
      _
    $region13: #{tpu_custom_call.1} parent=1 // pred_fallthru
      _
    // Predicated region
    $region14: #{tpu_custom_call.1} parent=1 // pred_check
      _
    $region15: #{tpu_custom_call.1} parent=1 // pred_check_branch
      %17 = sbr.rel (0) target = $region17
    $region16: #{tpu_custom_call.1} parent=1 // pred_region
      _
    $region17: #{tpu_custom_call.1} parent=1 // pred_fallthru
      _
    %v18 = vld [vmem:[%s0] sm:$0xff]
    %v19 = vld [vmem:[%s0 + $0x8] sm:$0xff]
    %v20 = vld [vmem:[%s0 + $0x10] sm:$0xff]
    %v21 = vld [vmem:[%s0 + $0x18] sm:$0xff]
    %v22 = vld [vmem:[%s0 + $0x20] sm:$0xff]
    %v23 = vld [vmem:[%s0 + $0x28] sm:$0xff]
    %v24 = vld [vmem:[%s0 + $0x30] sm:$0xff]
    %v25 = vld [vmem:[%s0 + $0x38] sm:$0xff]
    %v26 = vld [vmem:[%s0 + $0x40] sm:$0xff]
    %v27 = vld [vmem:[%s0 + $0x48] sm:$0xff]
    %v28 = vld [vmem:[%s0 + $0x50] sm:$0xff]
    %v29 = vld [vmem:[%s0 + $0x58] sm:$0xff]
    %v30 = vld [vmem:[%s0 + $0x60] sm:$0xff]
    %v31 = vld [vmem:[%s0 + $0x68] sm:$0xff]
    %v32 = vld [vmem:[%s0 + $0x70] sm:$0xff]
    %v33 = vld [vmem:[%s0 + $0x78] sm:$0xff]
    %v34 = vld [vmem:[%s0 + $0x80] sm:$0xff]
    %v35 = vld [vmem:[%s0 + $0x88] sm:$0xff]
    %v36 = vld [vmem:[%s0 + $0x90] sm:$0xff]
    %v37 = vld [vmem:[%s0 + $0x98] sm:$0xff]
    %v38 = vld [vmem:[%s0 + $0xa0] sm:$0xff]
    %v39 = vld [vmem:[%s0 + $0xa8] sm:$0xff]
    %v40 = vld [vmem:[%s0 + $0xb0] sm:$0xff]
    %v41 = vld [vmem:[%s0 + $0xb8] sm:$0xff]
    %v42 = vld [vmem:[%s0 + $0xc0] sm:$0xff]
    %v43 = vld [vmem:[%s0 + $0xc8] sm:$0xff]
    %v44 = vld [vmem:[%s0 + $0xd0] sm:$0xff]
    %v45 = vld [vmem:[%s0 + $0xd8] sm:$0xff]
    %v46 = vld [vmem:[%s0 + $0xe0] sm:$0xff]
    %v47 = vld [vmem:[%s0 + $0xe8] sm:$0xff]
    %v48 = vld [vmem:[%s0 + $0xf0] sm:$0xff]
    %v49 = vld [vmem:[%s0 + $0xf8] sm:$0xff]
    %v50 = vld [vmem:[%s1] sm:$0xff]
    %v51 = vld [vmem:[%s1 + $0x8] sm:$0xff]
    %v52 = vld [vmem:[%s1 + $0x10] sm:$0xff]
    %v53 = vld [vmem:[%s1 + $0x18] sm:$0xff]
    %v54 = vld [vmem:[%s1 + $0x20] sm:$0xff]
    %v55 = vld [vmem:[%s1 + $0x28] sm:$0xff]
    %v56 = vld [vmem:[%s1 + $0x30] sm:$0xff]
    %v57 = vld [vmem:[%s1 + $0x38] sm:$0xff]
    %vm58 = vcmask 523264
    %v60 = vsel %vm58, %v18, 0
    %v63 = vsel %vm58, %v19, 0
    %v66 = vsel %vm58, %v20, 0
    %v69 = vsel %vm58, %v21, 0
    %v72 = vsel %vm58, %v22, 0
    %v75 = vsel %vm58, %v23, 0
    %v78 = vsel %vm58, %v24, 0
    %v81 = vsel %vm58, %v25, 0
    %v84 = vsel %vm58, %v26, 0
    %v87 = vsel %vm58, %v27, 0
    %v90 = vsel %vm58, %v28, 0
    %v93 = vsel %vm58, %v29, 0
    %v96 = vsel %vm58, %v30, 0
    %v99 = vsel %vm58, %v31, 0
    %v102 = vsel %vm58, %v32, 0
    %v105 = vsel %vm58, %v33, 0
    %v108 = vsel %vm58, %v34, 0
    %v111 = vsel %vm58, %v35, 0
    %v114 = vsel %vm58, %v36, 0
    %v117 = vsel %vm58, %v37, 0
    %v120 = vsel %vm58, %v38, 0
    %v123 = vsel %vm58, %v39, 0
    %v126 = vsel %vm58, %v40, 0
    %v129 = vsel %vm58, %v41, 0
    %v132 = vsel %vm58, %v42, 0
    %v135 = vsel %vm58, %v43, 0
    %v138 = vsel %vm58, %v44, 0
    %v141 = vsel %vm58, %v45, 0
    %v144 = vsel %vm58, %v46, 0
    %v147 = vsel %vm58, %v47, 0
    %v150 = vsel %vm58, %v48, 0
    %v153 = vsel %vm58, %v49, 0
    %155 = vmatprep.subr.mxu0 0.0
    %156 = vmatpush1.msra.mxu0 %v50
    %157 = vmatprep.subr.mxu0 0.0
    %158 = vmatpush1.msra.mxu0 %v51
    %159 = vmatprep.subr.mxu0 0.0
    %160 = vmatpush1.msra.mxu0 %v52
    %161 = vmatprep.subr.mxu0 0.0
    %162 = vmatpush1.msra.mxu0 %v53
    %163 = vmatprep.subr.mxu0 0.0
    %164 = vmatpush1.msra.mxu0 %v54
    %165 = vmatprep.subr.mxu0 0.0
    %166 = vmatpush1.msra.mxu0 %v55
    %167 = vmatprep.subr.mxu0 0.0
    %168 = vmatpush1.msra.mxu0 %v56
    %169 = vmatprep.subr.mxu0 0.0
    %170 = vmatpush1.msra.mxu0 %v57
    %171 = vmatprep.subr.mxu0 0.0
    %172 = vmatpush1.msra.mxu0 0.0
    %173 = vmatprep.subr.mxu0 0.0
    %174 = vmatpush1.msra.mxu0 0.0
    %175 = vmatprep.subr.mxu0 0.0
    %176 = vmatpush1.msra.mxu0 0.0
    %177 = vmatprep.subr.mxu0 0.0
    %178 = vmatpush1.msra.mxu0 0.0
    %179 = vmatprep.subr.mxu0 0.0
    %180 = vmatpush1.msra.mxu0 0.0
    %181 = vmatprep.subr.mxu0 0.0
    %182 = vmatpush1.msra.mxu0 0.0
    %183 = vmatprep.subr.mxu0 0.0
    %184 = vmatpush1.msra.mxu0 0.0
    %185 = vmatprep.subr.mxu0 0.0
    %186 = vmatpush1.msra.mxu0 0.0
    %187 = vmatprep.subr.mxu0 0.0
    %188 = vmatpush1.msra.mxu0 0.0
    %189 = vmatprep.subr.mxu0 0.0
    %190 = vmatpush1.msra.mxu0 0.0
    %191 = vmatprep.subr.mxu0 0.0
    %192 = vmatpush1.msra.mxu0 0.0
    %193 = vmatprep.subr.mxu0 0.0
    %194 = vmatpush1.msra.mxu0 0.0
    %195 = vmatprep.subr.mxu0 0.0
    %196 = vmatpush1.msra.mxu0 0.0
    %197 = vmatprep.subr.mxu0 0.0
    %198 = vmatpush1.msra.mxu0 0.0
    %199 = vmatprep.subr.mxu0 0.0
    %200 = vmatpush1.msra.mxu0 0.0
    %201 = vmatprep.subr.mxu0 0.0
    %202 = vmatpush1.msra.mxu0 0.0
    %203 = vmatprep.subr.mxu0 0.0
    %204 = vmatpush1.msra.mxu0 0.0
    %205 = vmatprep.subr.mxu0 0.0
    %206 = vmatpush1.msra.mxu0 0.0
    %207 = vmatprep.subr.mxu0 0.0
    %208 = vmatpush1.msra.mxu0 0.0
    %209 = vmatprep.subr.mxu0 0.0
    %210 = vmatpush1.msra.mxu0 0.0
    %211 = vmatprep.subr.mxu0 0.0
    %212 = vmatpush1.msra.mxu0 0.0
    %213 = vmatprep.subr.mxu0 0.0
    %214 = vmatpush1.msra.mxu0 0.0
    %215 = vmatprep.subr.mxu0 0.0
    %216 = vmatpush1.msra.mxu0 0.0
    %217 = vmatprep.subr.mxu0 0.0
    %218 = vmatpush1.msra.mxu0 0.0
    %219 = vmatprep.mubr.f32.mxu0 0.0
    %220 = vmatmul.mubr.f32.gmra.mrb[0].mxu0 %v60
    %v221 = vpop.f32.mrb[0].mxu0
    %v222 = vadd.f32 0.0, %v221
    %v223 = vpop.f32.mrb[0].mxu0
    %224 = vmatprep.mubr.f32.mxu0 0.0
    %225 = vmatmul.mubr.f32.gmra.mrb[0].mxu0 %v63
    %v226 = vpop.f32.mrb[0].mxu0
    %v227 = vadd.f32 0.0, %v226
    %v228 = vpop.f32.mrb[0].mxu0
    %229 = vmatprep.mubr.f32.mxu0 0.0
    %230 = vmatmul.mubr.f32.gmra.mrb[0].mxu0 %v66
    %v231 = vpop.f32.mrb[0].mxu0
    %v232 = vadd.f32 0.0, %v231
    %v233 = vpop.f32.mrb[0].mxu0
    %234 = vmatprep.mubr.f32.mxu0 0.0
    %235 = vmatmul.mubr.f32.gmra.mrb[0].mxu0 %v69
    %v236 = vpop.f32.mrb[0].mxu0
    %v237 = vadd.f32 0.0, %v236
    %v238 = vpop.f32.mrb[0].mxu0
    %239 = vmatprep.mubr.f32.mxu0 0.0
    %240 = vmatmul.mubr.f32.gmra.mrb[0].mxu0 %v72
    %v241 = vpop.f32.mrb[0].mxu0
    %v242 = vadd.f32 0.0, %v241
    %v243 = vpop.f32.mrb[0].mxu0
    %244 = vmatprep.mubr.f32.mxu0 0.0
    %245 = vmatmul.mubr.f32.gmra.mrb[0].mxu0 %v75
    %v246 = vpop.f32.mrb[0].mxu0
    %v247 = vadd.f32 0.0, %v246
    %v248 = vpop.f32.mrb[0].mxu0
    %249 = vmatprep.mubr.f32.mxu0 0.0
    %250 = vmatmul.mubr.f32.gmra.mrb[0].mxu0 %v78
    %v251 = vpop.f32.mrb[0].mxu0
    %v252 = vadd.f32 0.0, %v251
    %v253 = vpop.f32.mrb[0].mxu0
    %254 = vmatprep.mubr.f32.mxu0 0.0
    %255 = vmatmul.mubr.f32.gmra.mrb[0].mxu0 %v81
    %v256 = vpop.f32.mrb[0].mxu0
    %v257 = vadd.f32 0.0, %v256
    %v258 = vpop.f32.mrb[0].mxu0
    %259 = vmatprep.mubr.f32.mxu0 0.0
    %260 = vmatmul.mubr.f32.gmra.mrb[0].mxu0 %v84
    %v261 = vpop.f32.mrb[0].mxu0
    %v262 = vadd.f32 0.0, %v261
    %v263 = vpop.f32.mrb[0].mxu0
    %264 = vmatprep.mubr.f32.mxu0 0.0
    %265 = vmatmul.mubr.f32.gmra.mrb[0].mxu0 %v87
    %v266 = vpop.f32.mrb[0].mxu0
    %v267 = vadd.f32 0.0, %v266
    %v268 = vpop.f32.mrb[0].mxu0
    %269 = vmatprep.mubr.f32.mxu0 0.0
    %270 = vmatmul.mubr.f32.gmra.mrb[0].mxu0 %v90
    %v271 = vpop.f32.mrb[0].mxu0
    %v272 = vadd.f32 0.0, %v271
    %v273 = vpop.f32.mrb[0].mxu0
    %274 = vmatprep.mubr.f32.mxu0 0.0
    %275 = vmatmul.mubr.f32.gmra.mrb[0].mxu0 %v93
    %v276 = vpop.f32.mrb[0].mxu0
    %v277 = vadd.f32 0.0, %v276
    %v278 = vpop.f32.mrb[0].mxu0
    %279 = vmatprep.mubr.f32.mxu0 0.0
    %280 = vmatmul.mubr.f32.gmra.mrb[0].mxu0 %v96
    %v281 = vpop.f32.mrb[0].mxu0
    %v282 = vadd.f32 0.0, %v281
    %v283 = vpop.f32.mrb[0].mxu0
    %284 = vmatprep.mubr.f32.mxu0 0.0
    %285 = vmatmul.mubr.f32.gmra.mrb[0].mxu0 %v99
    %v286 = vpop.f32.mrb[0].mxu0
    %v287 = vadd.f32 0.0, %v286
    %v288 = vpop.f32.mrb[0].mxu0
    %289 = vmatprep.mubr.f32.mxu0 0.0
    %290 = vmatmul.mubr.f32.gmra.mrb[0].mxu0 %v102
    %v291 = vpop.f32.mrb[0].mxu0
    %v292 = vadd.f32 0.0, %v291
    %v293 = vpop.f32.mrb[0].mxu0
    %294 = vmatprep.mubr.f32.mxu0 0.0
    %295 = vmatmul.mubr.f32.gmra.mrb[0].mxu0 %v105
    %v296 = vpop.f32.mrb[0].mxu0
    %v297 = vadd.f32 0.0, %v296
    %v298 = vpop.f32.mrb[0].mxu0
    %299 = vmatprep.mubr.f32.mxu0 0.0
    %300 = vmatmul.mubr.f32.gmra.mrb[0].mxu0 %v108
    %v301 = vpop.f32.mrb[0].mxu0
    %v302 = vadd.f32 0.0, %v301
    %v303 = vpop.f32.mrb[0].mxu0
    %304 = vmatprep.mubr.f32.mxu0 0.0
    %305 = vmatmul.mubr.f32.gmra.mrb[0].mxu0 %v111
    %v306 = vpop.f32.mrb[0].mxu0
    %v307 = vadd.f32 0.0, %v306
    %v308 = vpop.f32.mrb[0].mxu0
    %309 = vmatprep.mubr.f32.mxu0 0.0
    %310 = vmatmul.mubr.f32.gmra.mrb[0].mxu0 %v114
    %v311 = vpop.f32.mrb[0].mxu0
    %v312 = vadd.f32 0.0, %v311
    %v313 = vpop.f32.mrb[0].mxu0
    %314 = vmatprep.mubr.f32.mxu0 0.0
    %315 = vmatmul.mubr.f32.gmra.mrb[0].mxu0 %v117
    %v316 = vpop.f32.mrb[0].mxu0
    %v317 = vadd.f32 0.0, %v316
    %v318 = vpop.f32.mrb[0].mxu0
    %319 = vmatprep.mubr.f32.mxu0 0.0
    %320 = vmatmul.mubr.f32.gmra.mrb[0].mxu0 %v120
    %v321 = vpop.f32.mrb[0].mxu0
    %v322 = vadd.f32 0.0, %v321
    %v323 = vpop.f32.mrb[0].mxu0
    %324 = vmatprep.mubr.f32.mxu0 0.0
    %325 = vmatmul.mubr.f32.gmra.mrb[0].mxu0 %v123
    %v326 = vpop.f32.mrb[0].mxu0
    %v327 = vadd.f32 0.0, %v326
    %v328 = vpop.f32.mrb[0].mxu0
    %329 = vmatprep.mubr.f32.mxu0 0.0
    %330 = vmatmul.mubr.f32.gmra.mrb[0].mxu0 %v126
    %v331 = vpop.f32.mrb[0].mxu0
    %v332 = vadd.f32 0.0, %v331
    %v333 = vpop.f32.mrb[0].mxu0
    %334 = vmatprep.mubr.f32.mxu0 0.0
    %335 = vmatmul.mubr.f32.gmra.mrb[0].mxu0 %v129
    %v336 = vpop.f32.mrb[0].mxu0
    %v337 = vadd.f32 0.0, %v336
    %v338 = vpop.f32.mrb[0].mxu0
    %339 = vmatprep.mubr.f32.mxu0 0.0
    %340 = vmatmul.mubr.f32.gmra.mrb[0].mxu0 %v132
    %v341 = vpop.f32.mrb[0].mxu0
    %v342 = vadd.f32 0.0, %v341
    %v343 = vpop.f32.mrb[0].mxu0
    %344 = vmatprep.mubr.f32.mxu0 0.0
    %345 = vmatmul.mubr.f32.gmra.mrb[0].mxu0 %v135
    %v346 = vpop.f32.mrb[0].mxu0
    %v347 = vadd.f32 0.0, %v346
    %v348 = vpop.f32.mrb[0].mxu0
    %349 = vmatprep.mubr.f32.mxu0 0.0
    %350 = vmatmul.mubr.f32.gmra.mrb[0].mxu0 %v138
    %v351 = vpop.f32.mrb[0].mxu0
    %v352 = vadd.f32 0.0, %v351
    %v353 = vpop.f32.mrb[0].mxu0
    %354 = vmatprep.mubr.f32.mxu0 0.0
    %355 = vmatmul.mubr.f32.gmra.mrb[0].mxu0 %v141
    %v356 = vpop.f32.mrb[0].mxu0
    %v357 = vadd.f32 0.0, %v356
    %v358 = vpop.f32.mrb[0].mxu0
    %359 = vmatprep.mubr.f32.mxu0 0.0
    %360 = vmatmul.mubr.f32.gmra.mrb[0].mxu0 %v144
    %v361 = vpop.f32.mrb[0].mxu0
    %v362 = vadd.f32 0.0, %v361
    %v363 = vpop.f32.mrb[0].mxu0
    %364 = vmatprep.mubr.f32.mxu0 0.0
    %365 = vmatmul.mubr.f32.gmra.mrb[0].mxu0 %v147
    %v366 = vpop.f32.mrb[0].mxu0
    %v367 = vadd.f32 0.0, %v366
    %v368 = vpop.f32.mrb[0].mxu0
    %369 = vmatprep.mubr.f32.mxu0 0.0
    %370 = vmatmul.mubr.f32.gmra.mrb[0].mxu0 %v150
    %v371 = vpop.f32.mrb[0].mxu0
    %v372 = vadd.f32 0.0, %v371
    %v373 = vpop.f32.mrb[0].mxu0
    %374 = vmatprep.mubr.f32.mxu0 0.0
    %375 = vmatmul.mubr.f32.gmra.mrb[0].mxu0 %v153
    %v376 = vpop.f32.mrb[0].mxu0
    %v377 = vadd.f32 0.0, %v376
    %v378 = vpop.f32.mrb[0].mxu0
    %379 = vdwg.mxu0
    %v380 = vld [vmem:[%s2] sm:$0x3]
    %v383 = vunpack.c.l.s4 1966171168
    %v384 = vunpack.c.0.s8 %v383
    %v385 = vlaneseq
    %v386 = vshrl.u32 %v385, 7
    %v387 = vsub.s32 %v384, %v386
    %v388 = vrot.slane %v380, %v387
    %v389 = vcombine.high %v388, %v388
    %v391 = vunpack.c.l.s4 1966171168
    %v392 = vunpack.c.0.s8 %v391
    %v393 = vlaneseq
    %v394 = vshrl.u32 %v393, 7
    %v395 = vsub.s32 %v392, %v394
    %v396 = vrot.slane %v388, %v395
    %v398 = vunpack.c.l.s4 1966171168
    %v399 = vunpack.c.0.s8 %v398
    %v400 = vlaneseq
    %v401 = vshrl.u32 %v400, 7
    %v402 = vsub.s32 %v399, %v401
    %v403 = vrot.slane %v389, %v402
    %v404 = vlaneseq
    %v405 = vshrl.u32 %v404, 7
    %v406 = vsub.s32 0, %v405
    %v407 = vrot.slane %v396, %v406
    %v408 = vlaneseq
    %v409 = vshrl.u32 %v408, 7
    %v410 = vsub.s32 0, %v409
    %v411 = vrot.slane %v403, %v410
    %v414 = vadd.f32 %v222, %v407
    %v415 = vadd.f32 %v227, %v407
    %v416 = vadd.f32 %v232, %v407
    %v417 = vadd.f32 %v237, %v407
    %v418 = vadd.f32 %v242, %v407
    %v419 = vadd.f32 %v247, %v407
    %v420 = vadd.f32 %v252, %v407
    %v421 = vadd.f32 %v257, %v407
    %v422 = vadd.f32 %v262, %v407
    %v423 = vadd.f32 %v267, %v407
    %v424 = vadd.f32 %v272, %v407
    %v425 = vadd.f32 %v277, %v407
    %v426 = vadd.f32 %v282, %v407
    %v427 = vadd.f32 %v287, %v407
    %v428 = vadd.f32 %v292, %v407
    %v429 = vadd.f32 %v297, %v407
    %v430 = vadd.f32 %v302, %v411
    %v431 = vadd.f32 %v307, %v411
    %v432 = vadd.f32 %v312, %v411
    %v433 = vadd.f32 %v317, %v411
    %v434 = vadd.f32 %v322, %v411
    %v435 = vadd.f32 %v327, %v411
    %v436 = vadd.f32 %v332, %v411
    %v437 = vadd.f32 %v337, %v411
    %v438 = vadd.f32 %v342, %v411
    %v439 = vadd.f32 %v347, %v411
    %v440 = vadd.f32 %v352, %v411
    %v441 = vadd.f32 %v357, %v411
    %v442 = vadd.f32 %v362, %v411
    %v443 = vadd.f32 %v367, %v411
    %v444 = vadd.f32 %v372, %v411
    %v445 = vadd.f32 %v377, %v411
    %v446 = vtanh.pop %v414
    %v447 = vtanh.pop %v415
    %v448 = vtanh.pop %v416
    %v449 = vtanh.pop %v417
    %v450 = vtanh.pop %v418
    %v451 = vtanh.pop %v419
    %v452 = vtanh.pop %v420
    %v453 = vtanh.pop %v421
    %v454 = vtanh.pop %v422
    %v455 = vtanh.pop %v423
    %v456 = vtanh.pop %v424
    %v457 = vtanh.pop %v425
    %v458 = vtanh.pop %v426
    %v459 = vtanh.pop %v427
    %v460 = vtanh.pop %v428
    %v461 = vtanh.pop %v429
    %v462 = vtanh.pop %v430
    %v463 = vtanh.pop %v431
    %v464 = vtanh.pop %v432
    %v465 = vtanh.pop %v433
    %v466 = vtanh.pop %v434
    %v467 = vtanh.pop %v435
    %v468 = vtanh.pop %v436
    %v469 = vtanh.pop %v437
    %v470 = vtanh.pop %v438
    %v471 = vtanh.pop %v439
    %v472 = vtanh.pop %v440
    %v473 = vtanh.pop %v441
    %v474 = vtanh.pop %v442
    %v475 = vtanh.pop %v443
    %v476 = vtanh.pop %v444
    %v477 = vtanh.pop %v445
    %v478 = vld [vmem:[%s3] sm:$0x1]
    %v480 = vlaneseq
    %v481 = vshrl.u32 %v480, 7
    %v482 = vsub.s32 0, %v481
    %v483 = vrot.slane %v478, %v482
    %v485 = vmul.f32 %v446, %v483
    %v486 = vmul.f32 %v447, %v483
    %v487 = vmul.f32 %v448, %v483
    %v488 = vmul.f32 %v449, %v483
    %v489 = vmul.f32 %v450, %v483
    %v490 = vmul.f32 %v451, %v483
    %v491 = vmul.f32 %v452, %v483
    %v492 = vmul.f32 %v453, %v483
    %v493 = vmul.f32 %v454, %v483
    %v494 = vmul.f32 %v455, %v483
    %v495 = vmul.f32 %v456, %v483
    %v496 = vmul.f32 %v457, %v483
    %v497 = vmul.f32 %v458, %v483
    %v498 = vmul.f32 %v459, %v483
    %v499 = vmul.f32 %v460, %v483
    %v500 = vmul.f32 %v461, %v483
    %v501 = vmul.f32 %v462, %v483
    %v502 = vmul.f32 %v463, %v483
    %v503 = vmul.f32 %v464, %v483
    %v504 = vmul.f32 %v465, %v483
    %v505 = vmul.f32 %v466, %v483
    %v506 = vmul.f32 %v467, %v483
    %v507 = vmul.f32 %v468, %v483
    %v508 = vmul.f32 %v469, %v483
    %v509 = vmul.f32 %v470, %v483
    %v510 = vmul.f32 %v471, %v483
    %v511 = vmul.f32 %v472, %v483
    %v512 = vmul.f32 %v473, %v483
    %v513 = vmul.f32 %v474, %v483
    %v514 = vmul.f32 %v475, %v483
    %v515 = vmul.f32 %v476, %v483
    %v516 = vmul.f32 %v477, %v483
    %vm517 = vcmask 261120
    %v518 = vsel %vm517, %v485, 0.0
    %519 = vadd.xlane.f32.xlu0 %v518
    %v520 = vpop.xlane.xlu0 %519
    %v521 = vsel %vm517, %v486, 0.0
    %522 = vadd.xlane.f32.xlu0 %v521
    %v523 = vpop.xlane.xlu0 %522
    %v524 = vsel %vm517, %v487, 0.0
    %525 = vadd.xlane.f32.xlu0 %v524
    %v526 = vpop.xlane.xlu0 %525
    %v527 = vsel %vm517, %v488, 0.0
    %528 = vadd.xlane.f32.xlu0 %v527
    %v529 = vpop.xlane.xlu0 %528
    %v530 = vsel %vm517, %v489, 0.0
    %531 = vadd.xlane.f32.xlu0 %v530
    %v532 = vpop.xlane.xlu0 %531
    %v533 = vsel %vm517, %v490, 0.0
    %534 = vadd.xlane.f32.xlu0 %v533
    %v535 = vpop.xlane.xlu0 %534
    %v536 = vsel %vm517, %v491, 0.0
    %537 = vadd.xlane.f32.xlu0 %v536
    %v538 = vpop.xlane.xlu0 %537
    %v539 = vsel %vm517, %v492, 0.0
    %540 = vadd.xlane.f32.xlu0 %v539
    %v541 = vpop.xlane.xlu0 %540
    %v542 = vsel %vm517, %v493, 0.0
    %543 = vadd.xlane.f32.xlu0 %v542
    %v544 = vpop.xlane.xlu0 %543
    %v545 = vsel %vm517, %v494, 0.0
    %546 = vadd.xlane.f32.xlu0 %v545
    %v547 = vpop.xlane.xlu0 %546
    %v548 = vsel %vm517, %v495, 0.0
    %549 = vadd.xlane.f32.xlu0 %v548
    %v550 = vpop.xlane.xlu0 %549
    %v551 = vsel %vm517, %v496, 0.0
    %552 = vadd.xlane.f32.xlu0 %v551
    %v553 = vpop.xlane.xlu0 %552
    %v554 = vsel %vm517, %v497, 0.0
    %555 = vadd.xlane.f32.xlu0 %v554
    %v556 = vpop.xlane.xlu0 %555
    %v557 = vsel %vm517, %v498, 0.0
    %558 = vadd.xlane.f32.xlu0 %v557
    %v559 = vpop.xlane.xlu0 %558
    %v560 = vsel %vm517, %v499, 0.0
    %561 = vadd.xlane.f32.xlu0 %v560
    %v562 = vpop.xlane.xlu0 %561
    %v563 = vsel %vm517, %v500, 0.0
    %564 = vadd.xlane.f32.xlu0 %v563
    %v565 = vpop.xlane.xlu0 %564
    %v566 = vsel %vm517, %v501, 0.0
    %567 = vadd.xlane.f32.xlu0 %v566
    %v568 = vpop.xlane.xlu0 %567
    %v569 = vsel %vm517, %v502, 0.0
    %570 = vadd.xlane.f32.xlu0 %v569
    %v571 = vpop.xlane.xlu0 %570
    %v572 = vsel %vm517, %v503, 0.0
    %573 = vadd.xlane.f32.xlu0 %v572
    %v574 = vpop.xlane.xlu0 %573
    %v575 = vsel %vm517, %v504, 0.0
    %576 = vadd.xlane.f32.xlu0 %v575
    %v577 = vpop.xlane.xlu0 %576
    %v578 = vsel %vm517, %v505, 0.0
    %579 = vadd.xlane.f32.xlu0 %v578
    %v580 = vpop.xlane.xlu0 %579
    %v581 = vsel %vm517, %v506, 0.0
    %582 = vadd.xlane.f32.xlu0 %v581
    %v583 = vpop.xlane.xlu0 %582
    %v584 = vsel %vm517, %v507, 0.0
    %585 = vadd.xlane.f32.xlu0 %v584
    %v586 = vpop.xlane.xlu0 %585
    %v587 = vsel %vm517, %v508, 0.0
    %588 = vadd.xlane.f32.xlu0 %v587
    %v589 = vpop.xlane.xlu0 %588
    %v590 = vsel %vm517, %v509, 0.0
    %591 = vadd.xlane.f32.xlu0 %v590
    %v592 = vpop.xlane.xlu0 %591
    %v593 = vsel %vm517, %v510, 0.0
    %594 = vadd.xlane.f32.xlu0 %v593
    %v595 = vpop.xlane.xlu0 %594
    %v596 = vsel %vm517, %v511, 0.0
    %597 = vadd.xlane.f32.xlu0 %v596
    %v598 = vpop.xlane.xlu0 %597
    %v599 = vsel %vm517, %v512, 0.0
    %600 = vadd.xlane.f32.xlu0 %v599
    %v601 = vpop.xlane.xlu0 %600
    %v602 = vsel %vm517, %v513, 0.0
    %603 = vadd.xlane.f32.xlu0 %v602
    %v604 = vpop.xlane.xlu0 %603
    %v605 = vsel %vm517, %v514, 0.0
    %606 = vadd.xlane.f32.xlu0 %v605
    %v607 = vpop.xlane.xlu0 %606
    %v608 = vsel %vm517, %v515, 0.0
    %609 = vadd.xlane.f32.xlu0 %v608
    %v610 = vpop.xlane.xlu0 %609
    %v611 = vsel %vm517, %v516, 0.0
    %612 = vadd.xlane.f32.xlu0 %v611
    %v613 = vpop.xlane.xlu0 %612
    %v614 = vlaneseq
    %v615 = vand.u32 %v614, 127
    %vm616 = vcmp.lt.s32.totalorder %v615, 8
    %v649 = vlaneseq
    %v650 = vshrl.u32 %v649, 7
    %v651 = vsub.s32 %v615, %v650
    %v652 = vrot.slane %v520, %v651
    %v653 = vadd.s32 %v615, 4294967288
    %v654 = vlaneseq
    %v655 = vshrl.u32 %v654, 7
    %v656 = vsub.s32 %v653, %v655
    %v657 = vrot.slane %v523, %v656
    %vm658 = vcmask 130112
    %v659 = vsel %vm658, %v657, %v652
    %v660 = vadd.s32 %v615, 4294967280
    %v661 = vlaneseq
    %v662 = vshrl.u32 %v661, 7
    %v663 = vsub.s32 %v660, %v662
    %v664 = vrot.slane %v526, %v663
    %vm665 = vcmask 195712
    %v666 = vsel %vm665, %v664, %v659
    %v667 = vadd.s32 %v615, 4294967272
    %v668 = vlaneseq
    %v669 = vshrl.u32 %v668, 7
    %v670 = vsub.s32 %v667, %v669
    %v671 = vrot.slane %v529, %v670
    %vm672 = vcmask 261312
    %v673 = vsel %vm672, %v671, %v666
    %v674 = vadd.s32 %v615, 4294967264
    %v675 = vlaneseq
    %v676 = vshrl.u32 %v675, 7
    %v677 = vsub.s32 %v674, %v676
    %v678 = vrot.slane %v532, %v677
    %vm679 = vcmask 326912
    %v680 = vsel %vm679, %v678, %v673
    %v681 = vadd.s32 %v615, 4294967256
    %v682 = vlaneseq
    %v683 = vshrl.u32 %v682, 7
    %v684 = vsub.s32 %v681, %v683
    %v685 = vrot.slane %v535, %v684
    %vm686 = vcmask 392512
    %v687 = vsel %vm686, %v685, %v680
    %v688 = vadd.s32 %v615, 4294967248
    %v689 = vlaneseq
    %v690 = vshrl.u32 %v689, 7
    %v691 = vsub.s32 %v688, %v690
    %v692 = vrot.slane %v538, %v691
    %vm693 = vcmask 458112
    %v694 = vsel %vm693, %v692, %v687
    %v695 = vadd.s32 %v615, 4294967240
    %v696 = vlaneseq
    %v697 = vshrl.u32 %v696, 7
    %v698 = vsub.s32 %v695, %v697
    %v699 = vrot.slane %v541, %v698
    %vm700 = vcmask 523712
    %v701 = vsel %vm700, %v699, %v694
    %v702 = vadd.s32 %v615, 4294967232
    %v703 = vlaneseq
    %v704 = vshrl.u32 %v703, 7
    %v705 = vsub.s32 %v702, %v704
    %v706 = vrot.slane %v544, %v705
    %vm707 = vcmask 589312
    %v708 = vsel %vm707, %v706, %v701
    %v709 = vadd.s32 %v615, 4294967224
    %v710 = vlaneseq
    %v711 = vshrl.u32 %v710, 7
    %v712 = vsub.s32 %v709, %v711
    %v713 = vrot.slane %v547, %v712
    %vm714 = vcmask 654912
    %v715 = vsel %vm714, %v713, %v708
    %v716 = vadd.s32 %v615, 4294967216
    %v717 = vlaneseq
    %v718 = vshrl.u32 %v717, 7
    %v719 = vsub.s32 %v716, %v718
    %v720 = vrot.slane %v550, %v719
    %vm721 = vcmask 720512
    %v722 = vsel %vm721, %v720, %v715
    %v723 = vadd.s32 %v615, 4294967208
    %v724 = vlaneseq
    %v725 = vshrl.u32 %v724, 7
    %v726 = vsub.s32 %v723, %v725
    %v727 = vrot.slane %v553, %v726
    %vm728 = vcmask 786112
    %v729 = vsel %vm728, %v727, %v722
    %v730 = vadd.s32 %v615, 4294967200
    %v731 = vlaneseq
    %v732 = vshrl.u32 %v731, 7
    %v733 = vsub.s32 %v730, %v732
    %v734 = vrot.slane %v556, %v733
    %vm735 = vcmask 851712
    %v736 = vsel %vm735, %v734, %v729
    %v737 = vadd.s32 %v615, 4294967192
    %v738 = vlaneseq
    %v739 = vshrl.u32 %v738, 7
    %v740 = vsub.s32 %v737, %v739
    %v741 = vrot.slane %v559, %v740
    %vm742 = vcmask 917312
    %v743 = vsel %vm742, %v741, %v736
    %v744 = vadd.s32 %v615, 4294967184
    %v745 = vlaneseq
    %v746 = vshrl.u32 %v745, 7
    %v747 = vsub.s32 %v744, %v746
    %v748 = vrot.slane %v562, %v747
    %vm749 = vcmask 982912
    %v750 = vsel %vm749, %v748, %v743
    %v751 = vadd.s32 %v615, 4294967176
    %v752 = vlaneseq
    %v753 = vshrl.u32 %v752, 7
    %v754 = vsub.s32 %v751, %v753
    %v755 = vrot.slane %v565, %v754
    %vm756 = vcmask 1048512
    %v757 = vsel %vm756, %v755, %v750
    %v758 = vlaneseq
    %v759 = vshrl.u32 %v758, 7
    %v760 = vsub.s32 %v615, %v759
    %v761 = vrot.slane %v568, %v760
    %v762 = vlaneseq
    %v763 = vshrl.u32 %v762, 7
    %v764 = vsub.s32 %v653, %v763
    %v765 = vrot.slane %v571, %v764
    %v766 = vsel %vm658, %v765, %v761
    %v767 = vlaneseq
    %v768 = vshrl.u32 %v767, 7
    %v769 = vsub.s32 %v660, %v768
    %v770 = vrot.slane %v574, %v769
    %v771 = vsel %vm665, %v770, %v766
    %v772 = vlaneseq
    %v773 = vshrl.u32 %v772, 7
    %v774 = vsub.s32 %v667, %v773
    %v775 = vrot.slane %v577, %v774
    %v776 = vsel %vm672, %v775, %v771
    %v777 = vlaneseq
    %v778 = vshrl.u32 %v777, 7
    %v779 = vsub.s32 %v674, %v778
    %v780 = vrot.slane %v580, %v779
    %v781 = vsel %vm679, %v780, %v776
    %v782 = vlaneseq
    %v783 = vshrl.u32 %v782, 7
    %v784 = vsub.s32 %v681, %v783
    %v785 = vrot.slane %v583, %v784
    %v786 = vsel %vm686, %v785, %v781
    %v787 = vlaneseq
    %v788 = vshrl.u32 %v787, 7
    %v789 = vsub.s32 %v688, %v788
    %v790 = vrot.slane %v586, %v789
    %v791 = vsel %vm693, %v790, %v786
    %v792 = vlaneseq
    %v793 = vshrl.u32 %v792, 7
    %v794 = vsub.s32 %v695, %v793
    %v795 = vrot.slane %v589, %v794
    %v796 = vsel %vm700, %v795, %v791
    %v797 = vlaneseq
    %v798 = vshrl.u32 %v797, 7
    %v799 = vsub.s32 %v702, %v798
    %v800 = vrot.slane %v592, %v799
    %v801 = vsel %vm707, %v800, %v796
    %v802 = vlaneseq
    %v803 = vshrl.u32 %v802, 7
    %v804 = vsub.s32 %v709, %v803
    %v805 = vrot.slane %v595, %v804
    %v806 = vsel %vm714, %v805, %v801
    %v807 = vlaneseq
    %v808 = vshrl.u32 %v807, 7
    %v809 = vsub.s32 %v716, %v808
    %v810 = vrot.slane %v598, %v809
    %v811 = vsel %vm721, %v810, %v806
    %v812 = vlaneseq
    %v813 = vshrl.u32 %v812, 7
    %v814 = vsub.s32 %v723, %v813
    %v815 = vrot.slane %v601, %v814
    %v816 = vsel %vm728, %v815, %v811
    %v817 = vlaneseq
    %v818 = vshrl.u32 %v817, 7
    %v819 = vsub.s32 %v730, %v818
    %v820 = vrot.slane %v604, %v819
    %v821 = vsel %vm735, %v820, %v816
    %v822 = vlaneseq
    %v823 = vshrl.u32 %v822, 7
    %v824 = vsub.s32 %v737, %v823
    %v825 = vrot.slane %v607, %v824
    %v826 = vsel %vm742, %v825, %v821
    %v827 = vlaneseq
    %v828 = vshrl.u32 %v827, 7
    %v829 = vsub.s32 %v744, %v828
    %v830 = vrot.slane %v610, %v829
    %v831 = vsel %vm749, %v830, %v826
    %v832 = vlaneseq
    %v833 = vshrl.u32 %v832, 7
    %v834 = vsub.s32 %v751, %v833
    %v835 = vrot.slane %v613, %v834
    %v836 = vsel %vm756, %v835, %v831
    %vm837 = vcmask 1041409
    %v838 = vsel %vm837, %v836, %v757
    %v840 = vsel %vm616, %v838, -inf
    %vm841 = vcmask 1041408
    %v842 = vsel %vm841, %v840, -inf
    %843 = vmax.xlane.f32.xlu0 %v842
    %v844 = vpop.xlane.xlu0 %843
    %v845 = vsub.f32 %v840, %v844
    %v846 = vmul.f32 %v845, 1.442695
    %v847 = vpow.pop %v846
    %v848 = vsel %vm841, %v847, 0.0
    %849 = vadd.xlane.f32.xlu0 %v848
    %v850 = vpop.xlane.xlu0 %849
    %v851 = vrcp.pop %v850
    %v852 = vmul.f32 %v847, %v851
    %853 = vst [vmem:[#allocation2] sm:$0x3] %v852
    // Predicated region
    $region18: #{tpu_custom_call.1} parent=1 // pred_check
      _
    $region19: #{tpu_custom_call.1} parent=1 // pred_check_branch
      %855 = sbr.rel (0) target = $region21
    $region20: #{tpu_custom_call.1} parent=1 // pred_region
      %s857 = ssub.s32 32, 32
      %858 = vsyncadd [#allocation3], %s857
      %s860 = sshll.u32 [#allocation2], 4
      %s861 = int_to_ptr.vmem [resolvable:$true] %s860
      %863 = dma.vmem_to_hbm [thread:$0]  %s861, 32, %s4, [#allocation3]
    $region21: #{tpu_custom_call.1} parent=1 // pred_fallthru
      _
    // Predicated region
    $region22: #{tpu_custom_call.1} parent=1 // pred_check
      _
    $region23: #{tpu_custom_call.1} parent=1 // pred_check_branch
      %865 = sbr.rel (0) target = $region25
    $region24: #{tpu_custom_call.1} parent=1 // pred_region
      %866 = dma.done [#allocation3], 32
    $region25: #{tpu_custom_call.1} parent=1 // pred_fallthru
      _
    %867 = vsyncpa [#allocation3], 1

</llo_original>
